<compile_context>
chip_gen: v6e
topology: v6e:2x2x1
jax: 0.10.0
libtpu: 0.0.40
codegen_flags: <defaults>
</compile_context>

<pallas_src>
import functools
import math

import jax
import jax.numpy as jnp
from jax import lax
from jax.experimental import pallas as pl
from jax.experimental.pallas import tpu as pltpu


def _memory_unit_kernel(data_ref, mem_ref, temporal_ref, augment_ref,
                        *, dim, topk_count):
    # data_ref:     (tm, D)    bf16 tile of flattened (B*T, D) input rows
    # mem_ref:      (K, D)     bf16 full memory bank (resident)
    # temporal_ref: (1, 1, tm) f32 lane-dense top-k-mean attention per row
    # augment_ref:  (tm, D)    f32 attention-weighted readout
    tm = data_ref.shape[0]
    x = data_ref[...]                       # (tm, D) bf16
    mem = mem_ref[...]                      # (K, D)  bf16
    scale = 1.0 / math.sqrt(float(dim))

    # einsum('td,kd->tk'): bf16 operands on the MXU, f32 accumulation.
    logits = lax.dot_general(
        x, mem, (((1,), (1,)), ((), ())),
        preferred_element_type=jnp.float32) * scale            # (tm, K) f32
    att = jax.nn.sigmoid(logits)                                # (tm, K) f32 (EUP)

    # einsum('tk,kd->td'): bf16 operands, f32 accumulation.
    augment_ref[...] = jnp.dot(
        att.astype(mem.dtype), mem,
        preferred_element_type=jnp.float32).astype(augment_ref.dtype)

    # Top-k mean over K by iterative max extraction: ONE lane reduce per step.
    # Bit-exact tied maxima are removed together; this differs from torch.topk
    # only when two attention values are exactly equal, which sigmoid(f32
    # matmul) outputs essentially never produce.
    # TODO(synk): for very large K (>= ~512 slots) replace the extraction loop
    # with a single bitonic/sort-based top-k along K.
    def step(carry):
        acc, a = carry
        m = jnp.max(a, axis=-1, keepdims=True)                  # (tm, 1)
        return acc + m, jnp.where(a >= m, -jnp.inf, a)

    acc0 = jnp.zeros((tm, 1), jnp.float32)
    if topk_count <= 8:
        carry = (acc0, att)
        for _ in range(topk_count):                             # fully unrolled
            carry = step(carry)
        acc = carry[0]
    else:
        acc, _ = lax.fori_loop(0, topk_count, lambda _, c: step(c), (acc0, att))
    acc = acc * (1.0 / float(topk_count))                       # (tm, 1)

    # Lane-dense store: relayout per-row scalars (tm, 1) -> (1, 1, tm) via a
    # masked-diagonal sublane reduction (only broadcast/compare/select/sum,
    # all guaranteed to lower; avoids a minor-dim transpose and removes the
    # masked width-1 stores the review flagged).
    acc3 = acc.reshape(1, tm, 1)
    r = lax.broadcasted_iota(jnp.int32, (1, tm, tm), 1)
    c = lax.broadcasted_iota(jnp.int32, (1, tm, tm), 2)
    temporal_ref[...] = jnp.sum(
        jnp.where(r == c, acc3, 0.0), axis=1, keepdims=True
    ).astype(temporal_ref.dtype)


def _round_up(x, m):
    return -(-x // m) * m


def memory_unit_forward(data, memory_block, *, row_tile=512):
    """data: (B, T, D) float32; memory_block: (K, D) float32."""
    B, T, D = data.shape
    K, D2 = memory_block.shape
    assert D == D2
    BT = B * T
    topk_count = K // 16 + 1

    # Row tile: large (default 512) to feed the MXU and amortize per-step
    # overhead, multiple of 16 for bf16 sublane packing. Keep >= 2 grid steps
    # when possible so both v7x TensorCores get work.
    row_tile = max(16, _round_up(row_tile, 16))
    rup16 = _round_up(BT, 16)
    tm = min(row_tile, rup16)
    if tm == rup16 and BT > 32:
        tm = _round_up(-(-BT // 2), 16)
    BT_pad = _round_up(BT, tm)
    grid = BT_pad // tm

    # Flatten, pad the row axis (padded rows are sliced off afterwards) and
    # cast operands to bf16 (f32 accumulation inside the kernel).
    x2d = data.reshape(BT, D)
    if BT_pad != BT:
        x2d = jnp.pad(x2d, ((0, BT_pad - BT), (0, 0)))
    x2d = x2d.astype(jnp.bfloat16)
    mem_bf16 = memory_block.astype(jnp.bfloat16)

    # VMEM budget: double-buffered tiles + resident bank + f32 working set.
    # TODO(synk): on v7x (64 MiB VMEM) a pl.Buffered(1) pipeline_mode on the
    # constant memory-bank spec would halve its footprint for very large banks.
    vmem_bytes = (2 * tm * D * 2            # data tile (bf16, double-buffered)
                  + 2 * K * D * 2           # memory bank (bf16, double-buffered)
                  + 2 * tm * D * 4          # augment tile (f32, double-buffered)
                  + 2 * tm * 4              # temporal tile
                  + 3 * tm * K * 4          # logits / att / top-k working set
                  + 3 * tm * tm * 4)        # lane-dense relayout temporaries
    vmem_limit = min(64 * 1024 * 1024,
                     max(32 * 1024 * 1024, int(vmem_bytes * 1.5)))

    kernel = functools.partial(
        _memory_unit_kernel, dim=D, topk_count=topk_count)

    temporal3d, augment2d = pl.pallas_call(
        kernel,
        out_shape=(
            jax.ShapeDtypeStruct((grid, 1, tm), jnp.float32),
            jax.ShapeDtypeStruct((BT_pad, D), jnp.float32),
        ),
        grid_spec=pltpu.PrefetchScalarGridSpec(
            num_scalar_prefetch=0,
            grid=(grid,),
            in_specs=[
                pl.BlockSpec((tm, D), lambda i: (i, 0)),     # data rows (bf16)
                pl.BlockSpec((K, D), lambda i: (0, 0)),      # full memory bank
            ],
            out_specs=[
                pl.BlockSpec((1, 1, tm), lambda i: (i, 0, 0)),  # lane-dense temporal
                pl.BlockSpec((tm, D), lambda i: (i, 0)),        # augment
            ],
        ),
        compiler_params=pltpu.CompilerParams(
            dimension_semantics=("parallel",),
            vmem_limit_bytes=vmem_limit),
    )(x2d, mem_bf16)

    temporal_att = temporal3d.reshape(BT_pad)[:BT].reshape(B, T)
    augment = augment2d[:BT].reshape(B, T, D)
    return temporal_att, augment


def _reference(data, memory_block):
    """Pure-JAX f32 reference matching the PyTorch module."""
    D = data.shape[-1]
    K = memory_block.shape[0]
    att = jax.nn.sigmoid(
        jnp.einsum('btd,kd->btk', data, memory_block) / math.sqrt(D))
    top = lax.top_k(att, K // 16 + 1)[0]
    return top.mean(-1), jnp.einsum('btk,kd->btd', att, memory_block)


if __name__ == "__main__":
    # Small shapes consistent with the module: data (B, T, D), memory (nums, dim)
    B, T, D = 2, 8, 32
    NUMS = 64

    key = jax.random.PRNGKey(0)
    k_data, k_mem = jax.random.split(key)

    # Deterministic parameter init matching reset_parameters():
    # uniform(-stdv, stdv) with stdv = 1/sqrt(dim)
    stdv = 1.0 / math.sqrt(D)
    memory_block = jax.random.uniform(
        k_mem, (NUMS, D), dtype=jnp.float32, minval=-stdv, maxval=stdv)
    data = jax.random.normal(k_data, (B, T, D), dtype=jnp.float32)

    temporal_att, augment = memory_unit_forward(data, memory_block)
    jax.block_until_ready((temporal_att, augment))

    assert temporal_att.shape == (B, T)
    assert augment.shape == (B, T, D)

    # Loose-tolerance check vs the f32 reference (kernel uses bf16 MXU operands
    # with f32 accumulation).
    t_ref, a_ref = _reference(data, memory_block)
    assert bool(jnp.allclose(temporal_att, t_ref, rtol=5e-2, atol=5e-2))
    assert bool(jnp.allclose(augment, a_ref, rtol=5e-2, atol=5e-2))

    print("KERNEL_OK")
</pallas_src>

<mosaic_0001>
module attributes {stable_mosaic.version = 11 : i64} {
  func.func @_memory_unit_kernel(%arg0: i32, %arg1: memref<16x32xbf16, #tpu.memory_space<vmem>>, %arg2: memref<64x32xbf16, #tpu.memory_space<vmem>>, %arg3: memref<1x1x16xf32, #tpu.memory_space<vmem>>, %arg4: memref<16x32xf32, #tpu.memory_space<vmem>>) attributes {dimension_semantics = [#tpu.dimension_semantics<parallel>], iteration_bounds = array<i64: 1>, scalar_prefetch = 0 : i64, scratch_operands = 0 : i64, tpu.core_type = #tpu.core_type<tc>, window_params = [{transform_indices = @transform_0, window_bounds = array<i64: 16, 32>}, {pipeline_mode = #tpu.pipeline_mode<synchronous>, transform_indices = @transform_1, window_bounds = array<i64: 64, 32>}, {transform_indices = @transform_2, window_bounds = array<i64: 1, 1, 16>}, {transform_indices = @transform_3, window_bounds = array<i64: 16, 32>}]} {
    %c0 = arith.constant 0 : index
    %c0_0 = arith.constant 0 : index
    %0 = vector.load %arg1[%c0, %c0_0] : memref<16x32xbf16, #tpu.memory_space<vmem>>, vector<16x32xbf16>
    %c0_1 = arith.constant 0 : index
    %c0_2 = arith.constant 0 : index
    %1 = vector.load %arg2[%c0_1, %c0_2] : memref<64x32xbf16, #tpu.memory_space<vmem>>, vector<64x32xbf16>
    %cst = arith.constant dense<0.000000e+00> : vector<16x64xf32>
    %2 = tpu.matmul %0, %1, %cst {dimension_numbers = #tpu.dot_dimension_numbers<[1], [1], [0], [0], [0, 0, 1, 0], [], []>} : vector<16x32xbf16>, vector<64x32xbf16>, vector<16x64xf32> -> vector<16x64xf32>
    %cst_3 = arith.constant 0.176776692 : f32
    %3 = vector.broadcast %cst_3 : f32 to vector<16x64xf32>
    %4 = arith.mulf %2, %3 : vector<16x64xf32>
    %5 = arith.negf %4 : vector<16x64xf32>
    %6 = math.exp %5 : vector<16x64xf32>
    %cst_4 = arith.constant 1.000000e+00 : f32
    %7 = vector.broadcast %cst_4 : f32 to vector<16x64xf32>
    %8 = arith.addf %7, %6 : vector<16x64xf32>
    %9 = arith.divf %7, %8 : vector<16x64xf32>
    %10 = arith.truncf %9 : vector<16x64xf32> to vector<16x64xbf16>
    %cst_5 = arith.constant dense<0.000000e+00> : vector<16x32xf32>
    %11 = tpu.matmul %10, %1, %cst_5 {dimension_numbers = #tpu.dot_dimension_numbers<[1], [0], [0], [1], [0, 0, 1, 1], [], []>} : vector<16x64xbf16>, vector<64x32xbf16>, vector<16x32xf32> -> vector<16x32xf32>
    %c0_6 = arith.constant 0 : index
    %c0_7 = arith.constant 0 : index
    %12 = vector.load %arg4[%c0_6, %c0_7] : memref<16x32xf32, #tpu.memory_space<vmem>>, vector<16x32xf32>
    tpu.vector_store %arg4[%c0_6, %c0_7], %11 {strides = array<i32>} : memref<16x32xf32, #tpu.memory_space<vmem>>, vector<16x32xf32>,
    %cst_8 = arith.constant 0.000000e+00 : f32
    %13 = vector.broadcast %cst_8 : f32 to vector<16x1xf32>
    %cst_9 = arith.constant dense<0xFF800000> : vector<16xf32>
    %14 = vector.multi_reduction <maximumf>, %9, %cst_9 [1] : vector<16x64xf32> to vector<16xf32>
    %15 = vector.shape_cast %14 : vector<16xf32> to vector<16x1xf32>
    %16 = arith.addf %13, %15 : vector<16x1xf32>
    %17 = vector.broadcast %15 : vector<16x1xf32> to vector<16x64xf32>
    %18 = arith.cmpf oge, %9, %17 : vector<16x64xf32>
    %cst_10 = arith.constant 0xFF800000 : f32
    %19 = vector.broadcast %cst_10 : f32 to vector<16x64xf32>
    %20 = arith.select %18, %19, %9 : vector<16x64xi1>, vector<16x64xf32>
    %cst_11 = arith.constant dense<0xFF800000> : vector<16xf32>
    %21 = vector.multi_reduction <maximumf>, %20, %cst_11 [1] : vector<16x64xf32> to vector<16xf32>
    %22 = vector.shape_cast %21 : vector<16xf32> to vector<16x1xf32>
    %23 = arith.addf %16, %22 : vector<16x1xf32>
    %24 = vector.broadcast %22 : vector<16x1xf32> to vector<16x64xf32>
    %25 = arith.cmpf oge, %20, %24 : vector<16x64xf32>
    %cst_12 = arith.constant 0xFF800000 : f32
    %26 = vector.broadcast %cst_12 : f32 to vector<16x64xf32>
    %27 = arith.select %25, %26, %20 : vector<16x64xi1>, vector<16x64xf32>
    %cst_13 = arith.constant dense<0xFF800000> : vector<16xf32>
    %28 = vector.multi_reduction <maximumf>, %27, %cst_13 [1] : vector<16x64xf32> to vector<16xf32>
    %29 = vector.shape_cast %28 : vector<16xf32> to vector<16x1xf32>
    %30 = arith.addf %23, %29 : vector<16x1xf32>
    %31 = vector.broadcast %29 : vector<16x1xf32> to vector<16x64xf32>
    %32 = arith.cmpf oge, %27, %31 : vector<16x64xf32>
    %cst_14 = arith.constant 0xFF800000 : f32
    %33 = vector.broadcast %cst_14 : f32 to vector<16x64xf32>
    %34 = arith.select %32, %33, %27 : vector<16x64xi1>, vector<16x64xf32>
    %cst_15 = arith.constant dense<0xFF800000> : vector<16xf32>
    %35 = vector.multi_reduction <maximumf>, %34, %cst_15 [1] : vector<16x64xf32> to vector<16xf32>
    %36 = vector.shape_cast %35 : vector<16xf32> to vector<16x1xf32>
    %37 = arith.addf %30, %36 : vector<16x1xf32>
    %38 = vector.broadcast %36 : vector<16x1xf32> to vector<16x64xf32>
    %39 = arith.cmpf oge, %34, %38 : vector<16x64xf32>
    %cst_16 = arith.constant 0xFF800000 : f32
    %40 = vector.broadcast %cst_16 : f32 to vector<16x64xf32>
    %41 = arith.select %39, %40, %34 : vector<16x64xi1>, vector<16x64xf32>
    %cst_17 = arith.constant dense<0xFF800000> : vector<16xf32>
    %42 = vector.multi_reduction <maximumf>, %41, %cst_17 [1] : vector<16x64xf32> to vector<16xf32>
    %43 = vector.shape_cast %42 : vector<16xf32> to vector<16x1xf32>
    %44 = arith.addf %37, %43 : vector<16x1xf32>
    %cst_18 = arith.constant 2.000000e-01 : f32
    %45 = vector.broadcast %cst_18 : f32 to vector<16x1xf32>
    %46 = arith.mulf %44, %45 : vector<16x1xf32>
    %47 = vector.shape_cast %46 : vector<16x1xf32> to vector<1x16x1xf32>
    %48 = tpu.iota {dimensions = array<i32: 1>} : vector<1x16x16xi32>
    %49 = tpu.iota {dimensions = array<i32: 2>} : vector<1x16x16xi32>
    %50 = arith.cmpi eq, %48, %49 : vector<1x16x16xi32>
    %cst_19 = arith.constant 0.000000e+00 : f32
    %51 = vector.shape_cast %47 : vector<1x16x1xf32> to vector<1x16x1xf32>
    %52 = vector.broadcast %51 : vector<1x16x1xf32> to vector<1x16x16xf32>
    %53 = vector.broadcast %cst_19 : f32 to vector<1x16x16xf32>
    %54 = arith.select %50, %52, %53 : vector<1x16x16xi1>, vector<1x16x16xf32>
    %cst_20 = arith.constant dense<0.000000e+00> : vector<1x16xf32>
    %55 = vector.multi_reduction <add>, %54, %cst_20 [1] : vector<1x16x16xf32> to vector<1x16xf32>
    %56 = vector.shape_cast %55 : vector<1x16xf32> to vector<1x1x16xf32>
    %c0_21 = arith.constant 0 : index
    %c0_22 = arith.constant 0 : index
    %c0_23 = arith.constant 0 : index
    %57 = vector.load %arg3[%c0_21, %c0_22, %c0_23] : memref<1x1x16xf32, #tpu.memory_space<vmem>>, vector<1x1x16xf32>
    tpu.vector_store %arg3[%c0_21, %c0_22, %c0_23], %56 {strides = array<i32>} : memref<1x1x16xf32, #tpu.memory_space<vmem>>, vector<1x1x16xf32>,
    return
  }
  func.func @transform_0(%arg0: i32) -> (i32, i32) {
    %c0_i32 = arith.constant 0 : i32
    %c0_i32_0 = arith.constant 0 : i32
    return %arg0, %c0_i32 : i32, i32
  }
  func.func @transform_1(%arg0: i32) -> (i32, i32) {
    %c0_i32 = arith.constant 0 : i32
    %c0_i32_0 = arith.constant 0 : i32
    %c0_i32_1 = arith.constant 0 : i32
    return %c0_i32, %c0_i32_0 : i32, i32
  }
  func.func @transform_2(%arg0: i32) -> (i32, i32, i32) {
    %c0_i32 = arith.constant 0 : i32
    %c0_i32_0 = arith.constant 0 : i32
    %c0_i32_1 = arith.constant 0 : i32
    return %arg0, %c0_i32, %c0_i32_0 : i32, i32, i32
  }
  func.func @transform_3(%arg0: i32) -> (i32, i32) {
    %c0_i32 = arith.constant 0 : i32
    %c0_i32_0 = arith.constant 0 : i32
    return %arg0, %c0_i32 : i32, i32
  }
}

</mosaic_0001>

<llo_original>
// kernel: tpu_custom_call.1
$region0: #{tpu_custom_call.1}
  #allocation0 [shape = 'u32[]', space=smem, size = 0x4, offset = 0x4, fixed_abs, tag = 'smem constant byte address 0x4 - core index']
  #allocation1 [shape = 'u32[144,128]{1,0:T(1,128)}', space=vmem, size = 0x12000, scoped, tag = 'internal scratch']
  %s0 = inlined_call_operand.vmem [shape: bf16[16,32], index: 0, kind: input, shape index: {}]
  %s1 = inlined_call_operand.vmem [shape: bf16[64,32], index: 1, kind: input, shape index: {}]
  %s2 = inlined_call_operand.hbm [shape: f32[1,1,16], index: 2, kind: output, shape index: {0}]
  %s3 = inlined_call_operand.hbm [shape: f32[16,32], index: 3, kind: output, shape index: {1}]
  %4 = xla_tuple %s2, %s3
  %s5 = sld [smem:[#allocation0]]
  $region26: #{tpu_custom_call.1} parent=0
    _
  %s7 = ssub.s32 1, %s5
  %s8 = scalar_select 0, %s7, %s5
  $region1: #{tpu_custom_call.1} parent=0
    #allocation2 [shape = 'u8[512]{0}', space=vmem, size = 0x400, scoped, tag = 'output window, operand 0, single buffered']
    #allocation3 [shape = 's32[1]{0}', space=sflag, size = 0x4, scoped, tag = 'scoped memory for tpu_custom_call.1']
    #allocation4 [shape = 'u8[8192]{0}', space=vmem, size = 0x2000, scoped, tag = 'output window, operand 1, single buffered']
    #allocation5 [shape = 's32[1]{0}', space=sflag, size = 0x4, scoped, tag = 'scoped memory for tpu_custom_call.1']
    %9 = vsyncpa [#allocation3], 0
    %10 = vsyncpa [#allocation5], 0
    // Predicated region
    $region2: #{tpu_custom_call.1} parent=1 // pred_check
      _
    $region3: #{tpu_custom_call.1} parent=1 // pred_check_branch
      %12 = sbr.rel (0) target = $region5
    $region4: #{tpu_custom_call.1} parent=1 // pred_region
      _
    $region5: #{tpu_custom_call.1} parent=1 // pred_fallthru
      _
    // Predicated region
    $region6: #{tpu_custom_call.1} parent=1 // pred_check
      _
    $region7: #{tpu_custom_call.1} parent=1 // pred_check_branch
      %14 = sbr.rel (0) target = $region9
    $region8: #{tpu_custom_call.1} parent=1 // pred_region
      _
    $region9: #{tpu_custom_call.1} parent=1 // pred_fallthru
      _
    %v16 = vld [vmem:[%s0] sm:$0xf]
    %v17 = vld [vmem:[%s0 + $0x4] sm:$0xf]
    %v18 = vld [vmem:[%s1] sm:$0xf]
    %v19 = vld [vmem:[%s1 + $0x4] sm:$0xf]
    %v20 = vld [vmem:[%s1 + $0x8] sm:$0xf]
    %v21 = vld [vmem:[%s1 + $0xc] sm:$0xf]
    %v22 = vld [vmem:[%s1 + $0x10] sm:$0xf]
    %v23 = vld [vmem:[%s1 + $0x14] sm:$0xf]
    %v24 = vld [vmem:[%s1 + $0x18] sm:$0xf]
    %v25 = vld [vmem:[%s1 + $0x1c] sm:$0xf]
    %v28 = vunpack.c.l.b16 %v16
    %v29 = vunpack.c.l.b16 %v17
    %v30 = vpack.c.b16 %v29, %v28
    %v39 = vunpack.c.l.b16 %v18
    %v40 = vunpack.c.l.b16 %v19
    %v41 = vunpack.c.l.b16 %v20
    %v42 = vunpack.c.l.b16 %v21
    %v43 = vunpack.c.l.b16 %v22
    %v44 = vunpack.c.l.b16 %v23
    %v45 = vunpack.c.l.b16 %v24
    %v46 = vunpack.c.l.b16 %v25
    %v47 = vpack.c.b16 %v40, %v39
    %v48 = vpack.c.b16 %v42, %v41
    %v49 = vpack.c.b16 %v44, %v43
    %v50 = vpack.c.b16 %v46, %v45
    %vm51 = vcmask 261120
    %v53 = vsel %vm51, %v30, 0
    %v56 = vsel %vm51, %v47, 0
    %v59 = vsel %vm51, %v48, 0
    %v62 = vsel %vm51, %v49, 0
    %v65 = vsel %vm51, %v50, 0
    %67 = vmatprep.subr.bf16.mxu0 0
    %68 = vmatpush1.bf16.xpose.msra.mxu0 0
    %69 = vmatprep.subr.bf16.mxu0 0
    %70 = vmatpush1.bf16.xpose.msra.mxu0 0
    %71 = vmatprep.subr.bf16.mxu0 0
    %72 = vmatpush1.bf16.xpose.msra.mxu0 0
    %73 = vmatprep.subr.bf16.mxu0 0
    %74 = vmatpush1.bf16.xpose.msra.mxu0 0
    %75 = vmatprep.subr.bf16.mxu0 0
    %76 = vmatpush1.bf16.xpose.msra.mxu0 %v65
    %77 = vmatprep.subr.bf16.mxu0 0
    %78 = vmatpush1.bf16.xpose.msra.mxu0 %v62
    %79 = vmatprep.subr.bf16.mxu0 0
    %80 = vmatpush1.bf16.xpose.msra.mxu0 %v59
    %81 = vmatprep.subr.bf16.mxu0 0
    %82 = vmatpush1.bf16.xpose.msra.mxu0 %v56
    %83 = vmatprep.subr.bf16.mxu0 0
    %84 = vmatpush2.bf16.xpose.msra.mxu0 0
    %85 = vmatprep.subr.bf16.mxu0 0
    %86 = vmatpush2.bf16.xpose.msra.mxu0 0
    %87 = vmatprep.subr.bf16.mxu0 0
    %88 = vmatpush2.bf16.xpose.msra.mxu0 0
    %89 = vmatprep.subr.bf16.mxu0 0
    %90 = vmatpush2.bf16.xpose.msra.mxu0 0
    %91 = vmatprep.subr.bf16.mxu0 0
    %92 = vmatpush2.bf16.xpose.msra.mxu0 0
    %93 = vmatprep.subr.bf16.mxu0 0
    %94 = vmatpush2.bf16.xpose.msra.mxu0 0
    %95 = vmatprep.subr.bf16.mxu0 0
    %96 = vmatpush2.bf16.xpose.msra.mxu0 0
    %97 = vmatprep.subr.bf16.mxu0 0
    %98 = vmatpush2.bf16.xpose.msra.mxu0 0
    %99 = vmatprep.mubr.bf16.mxu0 0
    %100 = vmatmul.mubr.bf16.gmra.mxu0 %v53
    %v101 = vpop.f32.mrf.mxu0
    %v102 = vadd.f32 0.0, %v101
    %v103 = vpop.f32.mrf.mxu0
    %v104 = vpop.f32.mrf.mxu0
    %v105 = vadd.f32 0.0, %v104
    %v106 = vpop.f32.mrf.mxu0
    %107 = vdwg.mxu0
    %v108 = vmul.f32 %v102, 0.17677669
    %v109 = vmul.f32 %v105, 0.17677669
    %v110 = vxor.u32 %v108, 2147483648
    %v111 = vxor.u32 %v109, 2147483648
    %v112 = vmul.f32 %v110, 1.442695
    %v113 = vpow.pop %v112
    %v114 = vmul.f32 %v111, 1.442695
    %v115 = vpow.pop %v114
    %v116 = vadd.f32 %v113, 1.0
    %v117 = vadd.f32 %v115, 1.0
    %v118 = vrcp.pop %v116
    %v119 = vmul.f32 1.0, %v118
    %v120 = vrcp.pop %v117
    %v121 = vmul.f32 1.0, %v120
    %v122 = vpack.c.bf16 %v121, %v119
    %vm127 = vcmask 523264
    %v129 = vsel %vm127, %v122, 0
    %131 = vmatprep.subr.bf16.mxu0 0
    %132 = vmatpush1.bf16.msra.mxu0 0
    %133 = vmatprep.subr.bf16.mxu0 0
    %134 = vmatpush1.bf16.msra.mxu0 0
    %135 = vmatprep.subr.bf16.mxu0 0
    %136 = vmatpush1.bf16.msra.mxu0 0
    %137 = vmatprep.subr.bf16.mxu0 0
    %138 = vmatpush1.bf16.msra.mxu0 0
    %139 = vmatprep.subr.bf16.mxu0 0
    %140 = vmatpush1.bf16.msra.mxu0 %v50
    %141 = vmatprep.subr.bf16.mxu0 0
    %142 = vmatpush1.bf16.msra.mxu0 %v49
    %143 = vmatprep.subr.bf16.mxu0 0
    %144 = vmatpush1.bf16.msra.mxu0 %v48
    %145 = vmatprep.subr.bf16.mxu0 0
    %146 = vmatpush1.bf16.msra.mxu0 %v47
    %147 = vmatprep.subr.bf16.mxu0 0
    %148 = vmatpush2.bf16.msra.mxu0 0
    %149 = vmatprep.subr.bf16.mxu0 0
    %150 = vmatpush2.bf16.msra.mxu0 0
    %151 = vmatprep.subr.bf16.mxu0 0
    %152 = vmatpush2.bf16.msra.mxu0 0
    %153 = vmatprep.subr.bf16.mxu0 0
    %154 = vmatpush2.bf16.msra.mxu0 0
    %155 = vmatprep.subr.bf16.mxu0 0
    %156 = vmatpush2.bf16.msra.mxu0 0
    %157 = vmatprep.subr.bf16.mxu0 0
    %158 = vmatpush2.bf16.msra.mxu0 0
    %159 = vmatprep.subr.bf16.mxu0 0
    %160 = vmatpush2.bf16.msra.mxu0 0
    %161 = vmatprep.subr.bf16.mxu0 0
    %162 = vmatpush2.bf16.msra.mxu0 0
    %163 = vmatprep.mubr.bf16.mxu0 0
    %164 = vmatmul.mubr.bf16.gmra.mxu0 %v129
    %v165 = vpop.f32.mrf.mxu0
    %v166 = vadd.f32 0.0, %v165
    %v167 = vpop.f32.mrf.mxu0
    %v168 = vpop.f32.mrf.mxu0
    %v169 = vadd.f32 0.0, %v168
    %v170 = vpop.f32.mrf.mxu0
    %171 = vdwg.mxu0
    %172 = vst.msk [vmem:[#allocation4] sm:$0xff] %vm51, %v166
    %173 = vst.msk [vmem:[#allocation4 + $0x8] sm:$0xff] %vm51, %v169
    %v174 = vsel %vm127, %v119, -inf
    %175 = vmax.xlane.f32.xlu0 %v174
    %v176 = vpop.xlane.xlu0 %175
    %v177 = vsel %vm127, %v121, -inf
    %178 = vmax.xlane.f32.xlu0 %v177
    %v179 = vpop.xlane.xlu0 %178
    %v180 = vadd.f32 %v176, 0.0
    %v181 = vadd.f32 %v179, 0.0
    %vm182 = vcmp.ge.f32.partialorder %v119, %v176
    %vm183 = vcmp.ge.f32.partialorder %v121, %v179
    %v184 = vsel %vm182, -inf, %v119
    %v185 = vsel %vm183, -inf, %v121
    %v186 = vsel %vm127, %v184, -inf
    %187 = vmax.xlane.f32.xlu0 %v186
    %v188 = vpop.xlane.xlu0 %187
    %v189 = vsel %vm127, %v185, -inf
    %190 = vmax.xlane.f32.xlu0 %v189
    %v191 = vpop.xlane.xlu0 %190
    %v192 = vadd.f32 %v180, %v188
    %v193 = vadd.f32 %v181, %v191
    %vm194 = vcmp.ge.f32.partialorder %v184, %v188
    %vm195 = vcmp.ge.f32.partialorder %v185, %v191
    %v196 = vsel %vm194, -inf, %v184
    %v197 = vsel %vm195, -inf, %v185
    %v198 = vsel %vm127, %v196, -inf
    %199 = vmax.xlane.f32.xlu0 %v198
    %v200 = vpop.xlane.xlu0 %199
    %v201 = vsel %vm127, %v197, -inf
    %202 = vmax.xlane.f32.xlu0 %v201
    %v203 = vpop.xlane.xlu0 %202
    %v204 = vadd.f32 %v192, %v200
    %v205 = vadd.f32 %v193, %v203
    %vm206 = vcmp.ge.f32.partialorder %v196, %v200
    %vm207 = vcmp.ge.f32.partialorder %v197, %v203
    %v208 = vsel %vm206, -inf, %v196
    %v209 = vsel %vm207, -inf, %v197
    %v210 = vsel %vm127, %v208, -inf
    %211 = vmax.xlane.f32.xlu0 %v210
    %v212 = vpop.xlane.xlu0 %211
    %v213 = vsel %vm127, %v209, -inf
    %214 = vmax.xlane.f32.xlu0 %v213
    %v215 = vpop.xlane.xlu0 %214
    %v216 = vadd.f32 %v204, %v212
    %v217 = vadd.f32 %v205, %v215
    %vm218 = vcmp.ge.f32.partialorder %v208, %v212
    %vm219 = vcmp.ge.f32.partialorder %v209, %v215
    %v220 = vsel %vm218, -inf, %v208
    %v221 = vsel %vm219, -inf, %v209
    %v222 = vsel %vm127, %v220, -inf
    %223 = vmax.xlane.f32.xlu0 %v222
    %v224 = vpop.xlane.xlu0 %223
    %v225 = vsel %vm127, %v221, -inf
    %226 = vmax.xlane.f32.xlu0 %v225
    %v227 = vpop.xlane.xlu0 %226
    %v228 = vadd.f32 %v216, %v224
    %v229 = vadd.f32 %v217, %v227
    %v230 = vmul.f32 %v228, 0.2
    %v231 = vmul.f32 %v229, 0.2
    %v232 = vlaneseq
    %v233 = vshrl.u32 %v232, 7
    %v234 = vadd.s32 %v233, 8
    %v235 = vlaneseq
    %v236 = vand.u32 %v235, 127
    %vm237 = vcmp.eq.s32.totalorder %v233, %v236
    %vm238 = vcmp.eq.s32.totalorder %v234, %v236
    %v239 = vsel %vm237, %v230, 0.0
    %v240 = vsel %vm238, %v231, 0.0
    %vm241 = vcmask 130048
    %v242 = vsel %vm241, %v239, 0.0
    %v243 = vsel %vm241, %v240, 0.0
    %v244 = vadd.f32 %v242, %v243
    %v245 = vrot.slane %v244, 4
    %v246 = vadd.f32 %v244, %v245
    %v247 = vrot.slane %v246, 2
    %v248 = vadd.f32 %v246, %v247
    %v249 = vrot.slane %v248, 1
    %v250 = vadd.f32 %v248, %v249
    %vm251 = vcmask 122880
    %252 = vst.msk [vmem:[#allocation2] sm:$0x1] %vm251, %v250
    // Predicated region
    $region10: #{tpu_custom_call.1} parent=1 // pred_check
      _
    $region11: #{tpu_custom_call.1} parent=1 // pred_check_branch
      %254 = sbr.rel (0) target = $region13
    $region12: #{tpu_custom_call.1} parent=1 // pred_region
      %s256 = ssub.s32 16, 16
      %257 = vsyncadd [#allocation3], %s256
      %s259 = sshll.u32 [#allocation2], 4
      %s260 = int_to_ptr.vmem [resolvable:$true] %s259
      %262 = dma.vmem_to_hbm [thread:$0]  %s260, 16, %s2, [#allocation3]
    $region13: #{tpu_custom_call.1} parent=1 // pred_fallthru
      _
    // Predicated region
    $region14: #{tpu_custom_call.1} parent=1 // pred_check
      _
    $region15: #{tpu_custom_call.1} parent=1 // pred_check_branch
      %264 = sbr.rel (0) target = $region17
    $region16: #{tpu_custom_call.1} parent=1 // pred_region
      %s266 = ssub.s32 256, 256
      %267 = vsyncadd [#allocation5], %s266
      %s268 = sshll.u32 [#allocation4], 4
      %s269 = int_to_ptr.vmem [resolvable:$true] %s268
      %274 = dma.vmem_to_hbm [thread:$0]  %s269, 256, %s3, [#allocation5], 128, 128, 8
    $region17: #{tpu_custom_call.1} parent=1 // pred_fallthru
      _
    // Predicated region
    $region18: #{tpu_custom_call.1} parent=1 // pred_check
      _
    $region19: #{tpu_custom_call.1} parent=1 // pred_check_branch
      %276 = sbr.rel (0) target = $region21
    $region20: #{tpu_custom_call.1} parent=1 // pred_region
      %277 = dma.done [#allocation3], 16
    $region21: #{tpu_custom_call.1} parent=1 // pred_fallthru
      _
    // Predicated region
    $region22: #{tpu_custom_call.1} parent=1 // pred_check
      _
    $region23: #{tpu_custom_call.1} parent=1 // pred_check_branch
      %279 = sbr.rel (0) target = $region25
    $region24: #{tpu_custom_call.1} parent=1 // pred_region
      %280 = dma.done [#allocation5], 256
    $region25: #{tpu_custom_call.1} parent=1 // pred_fallthru
      _
    %281 = vsyncpa [#allocation3], 1
    %282 = vsyncpa [#allocation5], 1

</llo_original>
